<compile_context>
chip_gen: v5e
topology: v5e:2x2
jax: 0.10.0
libtpu: 0.0.40
codegen_flags: <defaults>
</compile_context>

<pallas_src>
import jax
import jax.numpy as jnp
from jax.experimental import pallas as pl
from jax.experimental.pallas import tpu as pltpu


def _qnet_kernel(x_ref, w1_ref, b1_ref, w2_ref, b2_ref, wo_ref, bo_ref, out_ref):
    # fc1 + ReLU
    h1 = jnp.dot(x_ref[...], w1_ref[...], preferred_element_type=jnp.float32) + b1_ref[...]
    h1 = jnp.maximum(h1, 0.0)

    # fc2 + ReLU
    h2 = jnp.dot(h1, w2_ref[...], preferred_element_type=jnp.float32) + b2_ref[...]
    h2 = jnp.maximum(h2, 0.0)

    # fused dueling head: single [F2, A] matmul + bias (combine folded into weights)
    out = jnp.dot(h2, wo_ref[...], preferred_element_type=jnp.float32) + bo_ref[...]
    out_ref[...] = out.astype(out_ref.dtype)


def _choose_batch_tile(batch):
    """Pick a sublane-aligned batch tile.

    - tiny batches: one block, padded to the sublane multiple (8)
    - mid-size batches: exactly two blocks (one per TensorCore on v7x)
    - large batches: 2048-row tiles (amortizes the ~0.35us per-step overhead)
    """
    block_batch = 2048
    pb = ((batch + 7) // 8) * 8          # sublane-aligned padded batch
    if pb <= 256:
        return pb                        # single block
    if pb <= 2 * block_batch:
        return ((pb // 2 + 7) // 8) * 8  # two blocks, sublane-aligned
    return block_batch


@jax.jit
def qnetwork_forward(x, fused_params):
    """Dueling-DQN MLP forward in one Pallas call, tiled over the batch.

    fused_params = (w1, b1, w2, b2, w_out, b_out) with the dueling combine
    already folded into (w_out, b_out) — see fuse_dueling_head().
    """
    w1, b1, w2, b2, wo, bo = fused_params

    B, S = x.shape
    F1 = w1.shape[1]
    F2 = w2.shape[1]
    A = wo.shape[1]

    # --- batch tiling: pad B to a multiple of the chosen tile ---
    bm = _choose_batch_tile(B)
    padded_b = ((B + bm - 1) // bm) * bm
    xp = jnp.pad(x, ((0, padded_b - B), (0, 0))) if padded_b != B else x
    grid = (padded_b // bm,)

    # advisory cost estimate (all f32)
    flops = 2 * padded_b * (S * F1 + F1 * F2 + F2 * A)
    bytes_accessed = 4 * (xp.size + w1.size + b1.size + w2.size + b2.size
                          + wo.size + bo.size + padded_b * A)

    out = pl.pallas_call(
        _qnet_kernel,
        out_shape=jax.ShapeDtypeStruct((padded_b, A), jnp.float32),
        grid=grid,
        in_specs=[
            pl.BlockSpec((bm, S), lambda i: (i, 0)),      # x: tiled over batch
            pl.BlockSpec((S, F1), lambda i: (0, 0)),      # W1: VMEM-resident
            pl.BlockSpec((1, F1), lambda i: (0, 0)),      # b1: VMEM-resident
            pl.BlockSpec((F1, F2), lambda i: (0, 0)),     # W2: VMEM-resident
            pl.BlockSpec((1, F2), lambda i: (0, 0)),      # b2: VMEM-resident
            pl.BlockSpec((F2, A), lambda i: (0, 0)),      # fused head W
            pl.BlockSpec((1, A), lambda i: (0, 0)),       # fused head b
        ],
        out_specs=pl.BlockSpec((bm, A), lambda i: (i, 0)),
        compiler_params=pltpu.CompilerParams(
            dimension_semantics=("parallel",)),
        cost_estimate=pl.CostEstimate(
            flops=flops, transcendentals=0, bytes_accessed=bytes_accessed),
    )(xp, w1, b1, w2, b2, wo, bo)

    return out[:B]


def fuse_dueling_head(params):
    """Fold the dueling combine into the head weights (do ONCE per weight update).

    Q_j = (h@Wv + bv) + (h@Wa_j + ba_j) - mean_k(h@Wa_k + ba_k)
        = h @ (Wa_j + Wv - mean_k Wa_k) + (ba_j + bv - mean_k ba_k)
    """
    w1, b1, w2, b2, wa, ba, wv, bv = params
    w_out = wa + wv - jnp.mean(wa, axis=1, keepdims=True)       # [F2, A]
    b_out = ba + bv - jnp.mean(ba, axis=1, keepdims=True)       # [1,  A]
    return (w1, b1, w2, b2, w_out, b_out)


def init_params(key, state_size, action_size, fc1_units=64, fc2_units=64):
    """Deterministic synthetic init (uniform, PyTorch-Linear-style fan_in scaling)."""
    ks = jax.random.split(key, 8)

    def lin(kw, kb, fan_in, fan_out):
        bound = 1.0 / jnp.sqrt(fan_in)
        w = jax.random.uniform(kw, (fan_in, fan_out), jnp.float32, -bound, bound)
        b = jax.random.uniform(kb, (1, fan_out), jnp.float32, -bound, bound)
        return w, b

    w1, b1 = lin(ks[0], ks[1], state_size, fc1_units)
    w2, b2 = lin(ks[2], ks[3], fc1_units, fc2_units)
    wa, ba = lin(ks[4], ks[5], fc2_units, action_size)
    wv, bv = lin(ks[6], ks[7], fc2_units, 1)
    return (w1, b1, w2, b2, wa, ba, wv, bv)


def _reference_forward(x, params):
    """Pure-JAX reference matching the PyTorch module exactly."""
    w1, b1, w2, b2, wa, ba, wv, bv = params
    h1 = jnp.maximum(x @ w1 + b1, 0.0)
    h2 = jnp.maximum(h1 @ w2 + b2, 0.0)
    adv = h2 @ wa + ba
    val = h2 @ wv + bv
    return val + adv - jnp.mean(adv, axis=1, keepdims=True)


if __name__ == "__main__":
    key = jax.random.PRNGKey(0)
    k_params, k_x = jax.random.split(key)

    batch = 2
    state_size = 8
    action_size = 4

    params = init_params(k_params, state_size, action_size, fc1_units=64, fc2_units=64)
    fused = fuse_dueling_head(params)   # done once, outside the forward path
    x = jax.random.normal(k_x, (batch, state_size), jnp.float32)

    out = qnetwork_forward(x, fused)
    jax.block_until_ready(out)

    ref = _reference_forward(x, params)
    assert out.shape == (batch, action_size)
    assert jnp.allclose(out, ref, atol=1e-5, rtol=1e-5), "mismatch vs reference"

    print("KERNEL_OK")
</pallas_src>

<mosaic_0001>
module attributes {stable_mosaic.version = 11 : i64} {
  func.func @_qnet_kernel(%arg0: i32, %arg1: memref<8x8xf32, #tpu.memory_space<vmem>>, %arg2: memref<8x64xf32, #tpu.memory_space<vmem>>, %arg3: memref<1x64xf32, #tpu.memory_space<vmem>>, %arg4: memref<64x64xf32, #tpu.memory_space<vmem>>, %arg5: memref<1x64xf32, #tpu.memory_space<vmem>>, %arg6: memref<64x4xf32, #tpu.memory_space<vmem>>, %arg7: memref<1x4xf32, #tpu.memory_space<vmem>>, %arg8: memref<8x4xf32, #tpu.memory_space<vmem>>) attributes {dimension_semantics = [#tpu.dimension_semantics<parallel>], iteration_bounds = array<i64: 1>, scalar_prefetch = 0 : i64, scratch_operands = 0 : i64, tpu.core_type = #tpu.core_type<tc>, window_params = [{transform_indices = @transform_0, window_bounds = array<i64: 8, 8>}, {pipeline_mode = #tpu.pipeline_mode<synchronous>, transform_indices = @transform_1, window_bounds = array<i64: 8, 64>}, {pipeline_mode = #tpu.pipeline_mode<synchronous>, transform_indices = @transform_2, window_bounds = array<i64: 1, 64>}, {pipeline_mode = #tpu.pipeline_mode<synchronous>, transform_indices = @transform_3, window_bounds = array<i64: 64, 64>}, {pipeline_mode = #tpu.pipeline_mode<synchronous>, transform_indices = @transform_4, window_bounds = array<i64: 1, 64>}, {pipeline_mode = #tpu.pipeline_mode<synchronous>, transform_indices = @transform_5, window_bounds = array<i64: 64, 4>}, {pipeline_mode = #tpu.pipeline_mode<synchronous>, transform_indices = @transform_6, window_bounds = array<i64: 1, 4>}, {transform_indices = @transform_7, window_bounds = array<i64: 8, 4>}]} {
    %c0 = arith.constant 0 : index
    %c0_0 = arith.constant 0 : index
    %0 = vector.load %arg1[%c0, %c0_0] : memref<8x8xf32, #tpu.memory_space<vmem>>, vector<8x8xf32>
    %c0_1 = arith.constant 0 : index
    %c0_2 = arith.constant 0 : index
    %1 = vector.load %arg2[%c0_1, %c0_2] : memref<8x64xf32, #tpu.memory_space<vmem>>, vector<8x64xf32>
    %cst = arith.constant dense<0.000000e+00> : vector<8x64xf32>
    %2 = tpu.matmul %0, %1, %cst {dimension_numbers = #tpu.dot_dimension_numbers<[1], [0], [0], [1], [0, 0, 1, 1], [], []>} : vector<8x8xf32>, vector<8x64xf32>, vector<8x64xf32> -> vector<8x64xf32>
    %c0_3 = arith.constant 0 : index
    %c0_4 = arith.constant 0 : index
    %3 = vector.load %arg3[%c0_3, %c0_4] : memref<1x64xf32, #tpu.memory_space<vmem>>, vector<1x64xf32>
    %4 = vector.broadcast %3 : vector<1x64xf32> to vector<8x64xf32>
    %5 = arith.addf %2, %4 : vector<8x64xf32>
    %cst_5 = arith.constant 0.000000e+00 : f32
    %6 = vector.broadcast %cst_5 : f32 to vector<8x64xf32>
    %7 = arith.maximumf %5, %6 : vector<8x64xf32>
    %c0_6 = arith.constant 0 : index
    %c0_7 = arith.constant 0 : index
    %8 = vector.load %arg4[%c0_6, %c0_7] : memref<64x64xf32, #tpu.memory_space<vmem>>, vector<64x64xf32>
    %cst_8 = arith.constant dense<0.000000e+00> : vector<8x64xf32>
    %9 = tpu.matmul %7, %8, %cst_8 {dimension_numbers = #tpu.dot_dimension_numbers<[1], [0], [0], [1], [0, 0, 1, 1], [], []>} : vector<8x64xf32>, vector<64x64xf32>, vector<8x64xf32> -> vector<8x64xf32>
    %c0_9 = arith.constant 0 : index
    %c0_10 = arith.constant 0 : index
    %10 = vector.load %arg5[%c0_9, %c0_10] : memref<1x64xf32, #tpu.memory_space<vmem>>, vector<1x64xf32>
    %11 = vector.broadcast %10 : vector<1x64xf32> to vector<8x64xf32>
    %12 = arith.addf %9, %11 : vector<8x64xf32>
    %cst_11 = arith.constant 0.000000e+00 : f32
    %13 = vector.broadcast %cst_11 : f32 to vector<8x64xf32>
    %14 = arith.maximumf %12, %13 : vector<8x64xf32>
    %c0_12 = arith.constant 0 : index
    %c0_13 = arith.constant 0 : index
    %15 = vector.load %arg6[%c0_12, %c0_13] : memref<64x4xf32, #tpu.memory_space<vmem>>, vector<64x4xf32>
    %cst_14 = arith.constant dense<0.000000e+00> : vector<8x4xf32>
    %16 = tpu.matmul %14, %15, %cst_14 {dimension_numbers = #tpu.dot_dimension_numbers<[1], [0], [0], [1], [0, 0, 1, 1], [], []>} : vector<8x64xf32>, vector<64x4xf32>, vector<8x4xf32> -> vector<8x4xf32>
    %c0_15 = arith.constant 0 : index
    %c0_16 = arith.constant 0 : index
    %17 = vector.load %arg7[%c0_15, %c0_16] : memref<1x4xf32, #tpu.memory_space<vmem>>, vector<1x4xf32>
    %18 = vector.broadcast %17 : vector<1x4xf32> to vector<8x4xf32>
    %19 = arith.addf %16, %18 : vector<8x4xf32>
    %c0_17 = arith.constant 0 : index
    %c0_18 = arith.constant 0 : index
    %20 = vector.load %arg8[%c0_17, %c0_18] : memref<8x4xf32, #tpu.memory_space<vmem>>, vector<8x4xf32>
    tpu.vector_store %arg8[%c0_17, %c0_18], %19 {strides = array<i32>} : memref<8x4xf32, #tpu.memory_space<vmem>>, vector<8x4xf32>,
    return
  }
  func.func @transform_0(%arg0: i32) -> (i32, i32) {
    %c0_i32 = arith.constant 0 : i32
    %c0_i32_0 = arith.constant 0 : i32
    return %arg0, %c0_i32 : i32, i32
  }
  func.func @transform_1(%arg0: i32) -> (i32, i32) {
    %c0_i32 = arith.constant 0 : i32
    %c0_i32_0 = arith.constant 0 : i32
    %c0_i32_1 = arith.constant 0 : i32
    return %c0_i32, %c0_i32_0 : i32, i32
  }
  func.func @transform_2(%arg0: i32) -> (i32, i32) {
    %c0_i32 = arith.constant 0 : i32
    %c0_i32_0 = arith.constant 0 : i32
    %c0_i32_1 = arith.constant 0 : i32
    return %c0_i32, %c0_i32_0 : i32, i32
  }
  func.func @transform_3(%arg0: i32) -> (i32, i32) {
    %c0_i32 = arith.constant 0 : i32
    %c0_i32_0 = arith.constant 0 : i32
    %c0_i32_1 = arith.constant 0 : i32
    return %c0_i32, %c0_i32_0 : i32, i32
  }
  func.func @transform_4(%arg0: i32) -> (i32, i32) {
    %c0_i32 = arith.constant 0 : i32
    %c0_i32_0 = arith.constant 0 : i32
    %c0_i32_1 = arith.constant 0 : i32
    return %c0_i32, %c0_i32_0 : i32, i32
  }
  func.func @transform_5(%arg0: i32) -> (i32, i32) {
    %c0_i32 = arith.constant 0 : i32
    %c0_i32_0 = arith.constant 0 : i32
    %c0_i32_1 = arith.constant 0 : i32
    return %c0_i32, %c0_i32_0 : i32, i32
  }
  func.func @transform_6(%arg0: i32) -> (i32, i32) {
    %c0_i32 = arith.constant 0 : i32
    %c0_i32_0 = arith.constant 0 : i32
    %c0_i32_1 = arith.constant 0 : i32
    return %c0_i32, %c0_i32_0 : i32, i32
  }
  func.func @transform_7(%arg0: i32) -> (i32, i32) {
    %c0_i32 = arith.constant 0 : i32
    %c0_i32_0 = arith.constant 0 : i32
    return %arg0, %c0_i32 : i32, i32
  }
}

</mosaic_0001>

<llo_original>
// kernel: qnetwork_forward.1
$region0: #{qnetwork_forward.1}
  #allocation0 [shape = 'u32[]', space=smem, size = 0x4, offset = 0x4, fixed_abs, tag = 'smem constant byte address 0x4 - core index']
  #allocation1 [shape = 'u32[72,128]{1,0:T(1,128)}', space=vmem, size = 0x9000, scoped, tag = 'internal scratch']
  %s0 = inlined_call_operand.vmem [shape: f32[8,8], index: 0, kind: input, shape index: {}]
  %s1 = inlined_call_operand.vmem [shape: f32[8,64], index: 1, kind: input, shape index: {}]
  %s2 = inlined_call_operand.vmem [shape: f32[1,64], index: 2, kind: input, shape index: {}]
  %s3 = inlined_call_operand.vmem [shape: f32[64,64], index: 3, kind: input, shape index: {}]
  %s4 = inlined_call_operand.vmem [shape: f32[1,64], index: 4, kind: input, shape index: {}]
  %s5 = inlined_call_operand.vmem [shape: f32[64,4], index: 5, kind: input, shape index: {}]
  %s6 = inlined_call_operand.vmem [shape: f32[1,4], index: 6, kind: input, shape index: {}]
  %s7 = inlined_call_operand.vmem [shape: f32[8,4], index: 7, kind: output, shape index: {}]
  %s8 = sld [smem:[#allocation0]]
  $region38: #{qnetwork_forward.1} parent=0
    _
  %s10 = ssub.s32 1, %s8
  %s11 = scalar_select 0, %s10, %s8
  // Predicated region
  $region2: #{qnetwork_forward.1} parent=0 // pred_check
    _
  $region3: #{qnetwork_forward.1} parent=0 // pred_check_branch
    %13 = sbr.rel (0) target = $region5
  $region4: #{qnetwork_forward.1} parent=0 // pred_region
    _
  $region5: #{qnetwork_forward.1} parent=0 // pred_fallthru
    _
  // Predicated region
  $region6: #{qnetwork_forward.1} parent=0 // pred_check
    _
  $region7: #{qnetwork_forward.1} parent=0 // pred_check_branch
    %15 = sbr.rel (0) target = $region9
  $region8: #{qnetwork_forward.1} parent=0 // pred_region
    _
  $region9: #{qnetwork_forward.1} parent=0 // pred_fallthru
    _
  // Predicated region
  $region10: #{qnetwork_forward.1} parent=0 // pred_check
    _
  $region11: #{qnetwork_forward.1} parent=0 // pred_check_branch
    %17 = sbr.rel (0) target = $region13
  $region12: #{qnetwork_forward.1} parent=0 // pred_region
    _
  $region13: #{qnetwork_forward.1} parent=0 // pred_fallthru
    _
  // Predicated region
  $region14: #{qnetwork_forward.1} parent=0 // pred_check
    _
  $region15: #{qnetwork_forward.1} parent=0 // pred_check_branch
    %19 = sbr.rel (0) target = $region17
  $region16: #{qnetwork_forward.1} parent=0 // pred_region
    _
  $region17: #{qnetwork_forward.1} parent=0 // pred_fallthru
    _
  // Predicated region
  $region18: #{qnetwork_forward.1} parent=0 // pred_check
    _
  $region19: #{qnetwork_forward.1} parent=0 // pred_check_branch
    %21 = sbr.rel (0) target = $region21
  $region20: #{qnetwork_forward.1} parent=0 // pred_region
    _
  $region21: #{qnetwork_forward.1} parent=0 // pred_fallthru
    _
  // Predicated region
  $region22: #{qnetwork_forward.1} parent=0 // pred_check
    _
  $region23: #{qnetwork_forward.1} parent=0 // pred_check_branch
    %23 = sbr.rel (0) target = $region25
  $region24: #{qnetwork_forward.1} parent=0 // pred_region
    _
  $region25: #{qnetwork_forward.1} parent=0 // pred_fallthru
    _
  // Predicated region
  $region26: #{qnetwork_forward.1} parent=0 // pred_check
    _
  $region27: #{qnetwork_forward.1} parent=0 // pred_check_branch
    %25 = sbr.rel (0) target = $region29
  $region28: #{qnetwork_forward.1} parent=0 // pred_region
    _
  $region29: #{qnetwork_forward.1} parent=0 // pred_fallthru
    _
  %v26 = vld [vmem:[%s0] sm:$0xff]
  %v27 = vld [vmem:[%s1] sm:$0xff]
  %v28 = vld [vmem:[%s2] sm:$0x1]
  %v30 = vperm.slane %v28, 0
  %vm32 = vcmask 64512
  %v34 = vsel %vm32, %v26, 0
  %36 = vmatpush.msra.mxu0 0.0
  %37 = vmatpush.msra.mxu0 0.0
  %38 = vmatpush.msra.mxu0 0.0
  %39 = vmatpush.msra.mxu0 0.0
  %40 = vmatpush.msra.mxu0 0.0
  %41 = vmatpush.msra.mxu0 0.0
  %42 = vmatpush.msra.mxu0 0.0
  %43 = vmatpush.msra.mxu0 0.0
  %44 = vmatpush.msra.mxu0 0.0
  %45 = vmatpush.msra.mxu0 0.0
  %46 = vmatpush.msra.mxu0 0.0
  %47 = vmatpush.msra.mxu0 0.0
  %48 = vmatpush.msra.mxu0 0.0
  %49 = vmatpush.msra.mxu0 0.0
  %50 = vmatpush.msra.mxu0 0.0
  %51 = vmatpush.msra.mxu0 %v27
  %52 = vmatmul.f32.gmra.mxu0 %v34
  %v53 = vpop.f32.mrf.mxu0
  %v54 = vadd.f32 %v30, %v53
  %55 = vdwg.mxu0
  %v56 = vmax.f32 %v54, 0.0
  %v57 = vld [vmem:[%s3] sm:$0xff]
  %v58 = vld [vmem:[%s3 + $0x8] sm:$0xff]
  %v59 = vld [vmem:[%s3 + $0x10] sm:$0xff]
  %v60 = vld [vmem:[%s3 + $0x18] sm:$0xff]
  %v61 = vld [vmem:[%s3 + $0x20] sm:$0xff]
  %v62 = vld [vmem:[%s3 + $0x28] sm:$0xff]
  %v63 = vld [vmem:[%s3 + $0x30] sm:$0xff]
  %v64 = vld [vmem:[%s3 + $0x38] sm:$0xff]
  %v65 = vld [vmem:[%s4] sm:$0x1]
  %v67 = vperm.slane %v65, 0
  %vm69 = vcmask 523264
  %v71 = vsel %vm69, %v56, 0
  %73 = vmatpush.msra.mxu0 0.0
  %74 = vmatpush.msra.mxu0 0.0
  %75 = vmatpush.msra.mxu0 0.0
  %76 = vmatpush.msra.mxu0 0.0
  %77 = vmatpush.msra.mxu0 0.0
  %78 = vmatpush.msra.mxu0 0.0
  %79 = vmatpush.msra.mxu0 0.0
  %80 = vmatpush.msra.mxu0 0.0
  %81 = vmatpush.msra.mxu0 %v64
  %82 = vmatpush.msra.mxu0 %v63
  %83 = vmatpush.msra.mxu0 %v62
  %84 = vmatpush.msra.mxu0 %v61
  %85 = vmatpush.msra.mxu0 %v60
  %86 = vmatpush.msra.mxu0 %v59
  %87 = vmatpush.msra.mxu0 %v58
  %88 = vmatpush.msra.mxu0 %v57
  %89 = vmatmul.f32.gmra.mxu0 %v71
  %v90 = vpop.f32.mrf.mxu0
  %v91 = vadd.f32 %v67, %v90
  %92 = vdwg.mxu0
  %v93 = vmax.f32 %v91, 0.0
  %v94 = vld [vmem:[%s5] sm:$0xff]
  %v95 = vld [vmem:[%s5 + $0x8] sm:$0xff]
  %v96 = vld [vmem:[%s5 + $0x10] sm:$0xff]
  %v97 = vld [vmem:[%s5 + $0x18] sm:$0xff]
  %v98 = vld [vmem:[%s5 + $0x20] sm:$0xff]
  %v99 = vld [vmem:[%s5 + $0x28] sm:$0xff]
  %v100 = vld [vmem:[%s5 + $0x30] sm:$0xff]
  %v101 = vld [vmem:[%s5 + $0x38] sm:$0xff]
  %v102 = vld [vmem:[%s6] sm:$0x1]
  %v104 = vperm.slane %v102, 0
  %v107 = vsel %vm69, %v93, 0
  %109 = vmatpush.msra.mxu0 0.0
  %110 = vmatpush.msra.mxu0 0.0
  %111 = vmatpush.msra.mxu0 0.0
  %112 = vmatpush.msra.mxu0 0.0
  %113 = vmatpush.msra.mxu0 0.0
  %114 = vmatpush.msra.mxu0 0.0
  %115 = vmatpush.msra.mxu0 0.0
  %116 = vmatpush.msra.mxu0 0.0
  %117 = vmatpush.msra.mxu0 %v101
  %118 = vmatpush.msra.mxu0 %v100
  %119 = vmatpush.msra.mxu0 %v99
  %120 = vmatpush.msra.mxu0 %v98
  %121 = vmatpush.msra.mxu0 %v97
  %122 = vmatpush.msra.mxu0 %v96
  %123 = vmatpush.msra.mxu0 %v95
  %124 = vmatpush.msra.mxu0 %v94
  %125 = vmatmul.f32.gmra.mxu0 %v107
  %v126 = vpop.f32.mrf.mxu0
  %v127 = vadd.f32 %v104, %v126
  %128 = vdwg.mxu0
  %vm129 = vcmask 31744
  %130 = vst.msk [vmem:[%s7] sm:$0xff] %vm129, %v127
  // Predicated region
  $region30: #{qnetwork_forward.1} parent=0 // pred_check
    _
  $region31: #{qnetwork_forward.1} parent=0 // pred_check_branch
    %132 = sbr.rel (0) target = $region33
  $region32: #{qnetwork_forward.1} parent=0 // pred_region
    _
  $region33: #{qnetwork_forward.1} parent=0 // pred_fallthru
    _
  // Predicated region
  $region34: #{qnetwork_forward.1} parent=0 // pred_check
    _
  $region35: #{qnetwork_forward.1} parent=0 // pred_check_branch
    %134 = sbr.rel (0) target = $region37
  $region36: #{qnetwork_forward.1} parent=0 // pred_region
    _
  $region37: #{qnetwork_forward.1} parent=0 // pred_fallthru
    _

</llo_original>
